<compile_context>
chip_gen: v7x
topology: tpu7x:2x2x1
jax: 0.10.0
libtpu: 0.0.40
codegen_flags: <defaults>
</compile_context>

<pallas_src>
import functools

import jax
import jax.numpy as jnp
from jax.experimental import pallas as pl
from jax.experimental.pallas import tpu as pltpu


def _ln_recentered_kernel(x_ref, w_ref, b_ref, o_ref, *, inv_hidden: float, eps: float):
    # LayerNorm in fp32. Two-pass variance (matches torch's formulation more closely
    # than E[x^2]-mu^2; kept for bit-faithfulness per review caveat).
    x = x_ref[...].astype(jnp.float32)
    mu = jnp.sum(x, axis=-1, keepdims=True) * inv_hidden
    xc = x - mu
    var = jnp.sum(xc * xc, axis=-1, keepdims=True) * inv_hidden
    inv = jax.lax.rsqrt(var + eps)                      # EUP slot (free here)

    # weight/bias arrive as fp32 (1, hidden) — no per-step cast needed.
    y = (xc * inv) * w_ref[...] + b_ref[...]

    # Reference rounds the LN output to its dtype, then re-centers in higher
    # precision (f64 in torch; f32 here — TPU has no f64) and casts back.
    y = y.astype(o_ref.dtype).astype(jnp.float32)
    y = y - jnp.sum(y, axis=-1, keepdims=True) * inv_hidden
    o_ref[...] = y.astype(o_ref.dtype)


def _sublane_pack(dtype) -> int:
    bits = jnp.dtype(dtype).itemsize * 8
    return max(8, 256 // bits)  # 8 for 32-bit, 16 for 16-bit, 32 for 8-bit


def _vmem_capacity_bytes() -> int:
    """Physical per-core VMEM; conservative fallback if the query is unavailable."""
    try:
        cap = int(pltpu.get_tpu_info().vmem_capacity_bytes)
        if cap > 0:
            return cap
    except Exception:
        pass
    return 64 * (1 << 20)  # v7x-sized fallback: safe on every generation


def ln_recentered(x: jax.Array,
                  weight: jax.Array | None = None,
                  bias: jax.Array | None = None,
                  eps: float = 1e-5) -> jax.Array:
    """LayerNorm over the last axis followed by mean-subtraction (LN_ forward)."""
    orig_shape = x.shape
    hidden = orig_shape[-1]
    rows = 1
    for d in orig_shape[:-1]:
        rows *= d

    if weight is None:
        weight = jnp.ones((hidden,), dtype=jnp.float32)
    if bias is None:
        bias = jnp.zeros((hidden,), dtype=jnp.float32)

    x2d = x.reshape(rows, hidden)                       # free for contiguous input
    # Cast affine params to fp32 once here (review item: avoid per-step casts).
    w2d = weight.astype(jnp.float32).reshape(1, hidden)
    b2d = bias.astype(jnp.float32).reshape(1, hidden)

    dtype_bytes = jnp.dtype(x.dtype).itemsize
    pack = _sublane_pack(x.dtype)

    # --- row-tile selection (mem-bound: biggest tile that fits the VMEM budget) ---
    # Per row: 2 double-buffered input bufs + 2 output bufs (input dtype) plus a
    # conservative 5 fp32 temporaries (x, xc, y, rounded-y, broadcast w*inv term).
    per_row_bytes = 4 * hidden * dtype_bytes + 5 * hidden * 4
    vmem_cap = _vmem_capacity_bytes()
    budget_bytes = int(vmem_cap * 0.7)                  # ~90 MiB v5e/v6e, ~45 MiB v7x
    row_tile = budget_bytes // per_row_bytes
    row_tile = max(pack, min(row_tile, 1024))
    row_tile = (row_tile // pack) * pack

    # Load-balance v7x's two TensorCores: keep >=4 grid steps when rows allow.
    min_grid_steps = 4
    if rows >= min_grid_steps * pack:
        balanced_tile = (rows // min_grid_steps // pack) * pack
        if balanced_tile >= pack:
            row_tile = min(row_tile, balanced_tile)

    rows_padded_up = pl.cdiv(rows, pack) * pack
    row_tile = min(row_tile, rows_padded_up)            # don't exceed the data itself
    row_tile = max(pack, row_tile)

    grid = (pl.cdiv(rows, row_tile),)                   # partial last block: clipped
                                                        # writeback; rows independent.

    # Raise the scoped VMEM limit to cover the chosen tile (the 16/32 MiB default is
    # too small for roofline-sized tiles); stay under physical VMEM with headroom.
    vmem_needed = row_tile * per_row_bytes + 2 * hidden * 4 + (4 << 20)
    vmem_limit = int(min(int(vmem_cap * 0.9), max(16 * (1 << 20), vmem_needed)))

    kernel = functools.partial(_ln_recentered_kernel,
                               inv_hidden=1.0 / float(hidden), eps=float(eps))

    cost = pl.CostEstimate(
        flops=9 * rows * hidden,
        transcendentals=rows,
        bytes_accessed=2 * rows * hidden * dtype_bytes + 2 * hidden * 4,
    )

    # TODO(synk): for very large hidden (>~16K fp32) add a second "arbitrary" grid
    # axis over hidden chunks with a partial-sum pass instead of shrinking row_tile.
    out2d = pl.pallas_call(
        kernel,
        out_shape=jax.ShapeDtypeStruct((rows, hidden), x.dtype),
        grid_spec=pltpu.PrefetchScalarGridSpec(
            num_scalar_prefetch=0,
            grid=grid,
            in_specs=[
                pl.BlockSpec((row_tile, hidden), lambda i: (i, 0)),
                pl.BlockSpec((1, hidden), lambda i: (0, 0)),
                pl.BlockSpec((1, hidden), lambda i: (0, 0)),
            ],
            out_specs=pl.BlockSpec((row_tile, hidden), lambda i: (i, 0)),
        ),
        compiler_params=pltpu.CompilerParams(
            dimension_semantics=("parallel",),
            vmem_limit_bytes=vmem_limit,
        ),
        cost_estimate=cost,
    )(x2d, w2d, b2d)

    return out2d.reshape(orig_shape)


if __name__ == "__main__":
    key = jax.random.PRNGKey(0)
    kx, kw, kb = jax.random.split(key, 3)

    # Small shapes consistent with the module: (batch=2, seq=8, hidden=32).
    batch, seq, hidden = 2, 8, 32
    eps = 1e-5

    x = jax.random.normal(kx, (batch, seq, hidden), dtype=jnp.float32)
    weight = jax.random.normal(kw, (hidden,), dtype=jnp.float32)
    bias = jax.random.normal(kb, (hidden,), dtype=jnp.float32)

    out = ln_recentered(x, weight, bias, eps=eps)
    jax.block_until_ready(out)

    # Pure-JAX reference (f32 stand-in for the torch f64 re-centering step).
    xf = x.astype(jnp.float32)
    mu = jnp.mean(xf, axis=-1, keepdims=True)
    var = jnp.mean((xf - mu) ** 2, axis=-1, keepdims=True)
    ln = ((xf - mu) * jax.lax.rsqrt(var + eps) * weight + bias).astype(x.dtype)
    lnf = ln.astype(jnp.float32)
    ref = (lnf - jnp.mean(lnf, axis=-1, keepdims=True)).astype(x.dtype)

    assert jnp.allclose(out, ref, atol=1e-4, rtol=1e-4), "mismatch vs reference"
    print("KERNEL_OK")
</pallas_src>

<mosaic_0001>
module attributes {stable_mosaic.version = 11 : i64} {
  func.func @_ln_recentered_kernel(%arg0: i32, %arg1: memref<16x32xf32, #tpu.memory_space<vmem>>, %arg2: memref<1x32xf32, #tpu.memory_space<vmem>>, %arg3: memref<1x32xf32, #tpu.memory_space<vmem>>, %arg4: memref<16x32xf32, #tpu.memory_space<vmem>>) attributes {dimension_semantics = [#tpu.dimension_semantics<parallel>], iteration_bounds = array<i64: 1>, scalar_prefetch = 0 : i64, scratch_operands = 0 : i64, tpu.core_type = #tpu.core_type<tc>, window_params = [{transform_indices = @transform_0, window_bounds = array<i64: 16, 32>}, {pipeline_mode = #tpu.pipeline_mode<synchronous>, transform_indices = @transform_1, window_bounds = array<i64: 1, 32>}, {pipeline_mode = #tpu.pipeline_mode<synchronous>, transform_indices = @transform_2, window_bounds = array<i64: 1, 32>}, {transform_indices = @transform_3, window_bounds = array<i64: 16, 32>}]} {
    %c0 = arith.constant 0 : index
    %c0_0 = arith.constant 0 : index
    %0 = vector.load %arg1[%c0, %c0_0] : memref<16x32xf32, #tpu.memory_space<vmem>>, vector<16x32xf32>
    %cst = arith.constant dense<0.000000e+00> : vector<16xf32>
    %1 = vector.multi_reduction <add>, %0, %cst [1] : vector<16x32xf32> to vector<16xf32>
    %2 = vector.shape_cast %1 : vector<16xf32> to vector<16x1xf32>
    %cst_1 = arith.constant 3.125000e-02 : f32
    %3 = vector.broadcast %cst_1 : f32 to vector<16x1xf32>
    %4 = arith.mulf %2, %3 : vector<16x1xf32>
    %5 = vector.broadcast %4 : vector<16x1xf32> to vector<16x32xf32>
    %6 = arith.subf %0, %5 : vector<16x32xf32>
    %7 = arith.mulf %6, %6 : vector<16x32xf32>
    %cst_2 = arith.constant dense<0.000000e+00> : vector<16xf32>
    %8 = vector.multi_reduction <add>, %7, %cst_2 [1] : vector<16x32xf32> to vector<16xf32>
    %9 = vector.shape_cast %8 : vector<16xf32> to vector<16x1xf32>
    %cst_3 = arith.constant 3.125000e-02 : f32
    %10 = vector.broadcast %cst_3 : f32 to vector<16x1xf32>
    %11 = arith.mulf %9, %10 : vector<16x1xf32>
    %cst_4 = arith.constant 9.99999974E-6 : f32
    %12 = vector.broadcast %cst_4 : f32 to vector<16x1xf32>
    %13 = arith.addf %11, %12 : vector<16x1xf32>
    %14 = math.rsqrt %13 : vector<16x1xf32>
    %15 = vector.broadcast %14 : vector<16x1xf32> to vector<16x32xf32>
    %16 = arith.mulf %6, %15 : vector<16x32xf32>
    %c0_5 = arith.constant 0 : index
    %c0_6 = arith.constant 0 : index
    %17 = vector.load %arg2[%c0_5, %c0_6] : memref<1x32xf32, #tpu.memory_space<vmem>>, vector<1x32xf32>
    %18 = vector.broadcast %17 : vector<1x32xf32> to vector<16x32xf32>
    %19 = arith.mulf %16, %18 : vector<16x32xf32>
    %c0_7 = arith.constant 0 : index
    %c0_8 = arith.constant 0 : index
    %20 = vector.load %arg3[%c0_7, %c0_8] : memref<1x32xf32, #tpu.memory_space<vmem>>, vector<1x32xf32>
    %21 = vector.broadcast %20 : vector<1x32xf32> to vector<16x32xf32>
    %22 = arith.addf %19, %21 : vector<16x32xf32>
    %cst_9 = arith.constant dense<0.000000e+00> : vector<16xf32>
    %23 = vector.multi_reduction <add>, %22, %cst_9 [1] : vector<16x32xf32> to vector<16xf32>
    %24 = vector.shape_cast %23 : vector<16xf32> to vector<16x1xf32>
    %cst_10 = arith.constant 3.125000e-02 : f32
    %25 = vector.broadcast %cst_10 : f32 to vector<16x1xf32>
    %26 = arith.mulf %24, %25 : vector<16x1xf32>
    %27 = vector.broadcast %26 : vector<16x1xf32> to vector<16x32xf32>
    %28 = arith.subf %22, %27 : vector<16x32xf32>
    %c0_11 = arith.constant 0 : index
    %c0_12 = arith.constant 0 : index
    %29 = vector.load %arg4[%c0_11, %c0_12] : memref<16x32xf32, #tpu.memory_space<vmem>>, vector<16x32xf32>
    tpu.vector_store %arg4[%c0_11, %c0_12], %28 {strides = array<i32>} : memref<16x32xf32, #tpu.memory_space<vmem>>, vector<16x32xf32>,
    return
  }
  func.func @transform_0(%arg0: i32) -> (i32, i32) {
    %c0_i32 = arith.constant 0 : i32
    %c0_i32_0 = arith.constant 0 : i32
    return %arg0, %c0_i32 : i32, i32
  }
  func.func @transform_1(%arg0: i32) -> (i32, i32) {
    %c0_i32 = arith.constant 0 : i32
    %c0_i32_0 = arith.constant 0 : i32
    %c0_i32_1 = arith.constant 0 : i32
    return %c0_i32, %c0_i32_0 : i32, i32
  }
  func.func @transform_2(%arg0: i32) -> (i32, i32) {
    %c0_i32 = arith.constant 0 : i32
    %c0_i32_0 = arith.constant 0 : i32
    %c0_i32_1 = arith.constant 0 : i32
    return %c0_i32, %c0_i32_0 : i32, i32
  }
  func.func @transform_3(%arg0: i32) -> (i32, i32) {
    %c0_i32 = arith.constant 0 : i32
    %c0_i32_0 = arith.constant 0 : i32
    return %arg0, %c0_i32 : i32, i32
  }
}

</mosaic_0001>

<llo_original>
// kernel: tpu_custom_call.1
$region0: #{tpu_custom_call.1}
  #allocation0 [shape = 'u32[]', space=smem, size = 0x4, offset = 0x4, fixed_abs, tag = 'smem constant byte address 0x4 - core index']
  #allocation1 [shape = 'u32[144,128]{1,0:T(1,128)}', space=vmem, size = 0x12000, scoped, tag = 'internal scratch']
  %s0 = inlined_call_operand.hbm [shape: f32[16,32], index: 0, kind: input, shape index: {}]
  %s1 = inlined_call_operand.vmem [shape: f32[1,32], index: 1, kind: input, shape index: {}]
  %s2 = inlined_call_operand.vmem [shape: f32[1,32], index: 2, kind: input, shape index: {}]
  %s3 = inlined_call_operand.hbm [shape: f32[16,32], index: 3, kind: output, shape index: {}]
  %s4 = sld [smem:[#allocation0]]
  $region26: #{tpu_custom_call.1} parent=0
    _
  %s6 = ssub.s32 1, %s4
  %s7 = scalar_select 0, %s6, %s4
  $region1: #{tpu_custom_call.1} parent=0
    #allocation2 [shape = 'u8[8192]{0}', space=vmem, size = 0x2000, scoped, tag = 'input window, operand 0, single buffered']
    #allocation3 [shape = 's32[1]{0}', space=sflag, size = 0x4, scoped, tag = 'scoped memory for tpu_custom_call.1']
    #allocation4 [shape = 's32[1]{0}', space=sflag, size = 0x4, scoped, tag = 'scoped memory for tpu_custom_call.1']
    #allocation5 [shape = 'u8[8192]{0}', space=vmem, size = 0x2000, scoped, tag = 'output window, operand 0, single buffered']
    %8 = vsyncpa [#allocation3], 0
    %9 = vsyncpa [#allocation4], 0
    // Predicated region
    $region2: #{tpu_custom_call.1} parent=1 // pred_check
      _
    $region3: #{tpu_custom_call.1} parent=1 // pred_check_branch
      %11 = sbr.rel (0) target = $region5
    $region4: #{tpu_custom_call.1} parent=1 // pred_region
      %s13 = ssub.s32 256, 256
      %14 = vsyncadd [#allocation3], %s13
      %s15 = sshll.u32 [#allocation2], 4
      %s16 = int_to_ptr.vmem [resolvable:$true] %s15
      %21 = dma.hbm_to_vmem [thread:$0]  %s0, 256, %s16, [#allocation3], 128, 128, 8
    $region5: #{tpu_custom_call.1} parent=1 // pred_fallthru
      _
    // Predicated region
    $region6: #{tpu_custom_call.1} parent=1 // pred_check
      _
    $region7: #{tpu_custom_call.1} parent=1 // pred_check_branch
      %23 = sbr.rel (0) target = $region9
    $region8: #{tpu_custom_call.1} parent=1 // pred_region
      _
    $region9: #{tpu_custom_call.1} parent=1 // pred_fallthru
      _
    // Predicated region
    $region10: #{tpu_custom_call.1} parent=1 // pred_check
      _
    $region11: #{tpu_custom_call.1} parent=1 // pred_check_branch
      %25 = sbr.rel (0) target = $region13
    $region12: #{tpu_custom_call.1} parent=1 // pred_region
      _
    $region13: #{tpu_custom_call.1} parent=1 // pred_fallthru
      _
    // Predicated region
    $region14: #{tpu_custom_call.1} parent=1 // pred_check
      _
    $region15: #{tpu_custom_call.1} parent=1 // pred_check_branch
      %27 = sbr.rel (0) target = $region17
    $region16: #{tpu_custom_call.1} parent=1 // pred_region
      %28 = dma.done [#allocation3], 256
    $region17: #{tpu_custom_call.1} parent=1 // pred_fallthru
      _
    %v29 = vld [vmem:[#allocation2] sm:$0xff]
    %v30 = vld [vmem:[#allocation2 + $0x8] sm:$0xff]
    %vm31 = vcmask 261120
    %v32 = vsel %vm31, %v29, 0.0
    %33 = vadd.xlane.f32.xlu0 %v32
    %v34 = vpop.xlane.xlu0 %33
    %v35 = vsel %vm31, %v30, 0.0
    %36 = vadd.xlane.f32.xlu0 %v35
    %v37 = vpop.xlane.xlu0 %36
    %v38 = vmul.f32 %v34, 0.03125
    %v39 = vmul.f32 %v37, 0.03125
    %v40 = vsub.f32 %v29, %v38
    %v41 = vsub.f32 %v30, %v39
    %v42 = vmul.f32 %v40, %v40
    %v43 = vmul.f32 %v41, %v41
    %v44 = vsel %vm31, %v42, 0.0
    %45 = vadd.xlane.f32.xlu0 %v44
    %v46 = vpop.xlane.xlu0 %45
    %v47 = vsel %vm31, %v43, 0.0
    %48 = vadd.xlane.f32.xlu0 %v47
    %v49 = vpop.xlane.xlu0 %48
    %v50 = vmul.f32 %v46, 0.03125
    %v51 = vmul.f32 %v49, 0.03125
    %v52 = vadd.f32 %v50, 1e-05
    %v53 = vadd.f32 %v51, 1e-05
    %v54 = vrsqrt.pop %v52
    %v55 = vrsqrt.pop %v53
    %v56 = vmul.f32 %v40, %v54
    %v57 = vmul.f32 %v41, %v55
    %v58 = vld [vmem:[%s1] sm:$0x1]
    %v60 = vlaneseq
    %v61 = vshrl.u32 %v60, 7
    %v62 = vsub.s32 0, %v61
    %v63 = vrot.slane %v58, %v62
    %v65 = vmul.f32 %v56, %v63
    %v66 = vmul.f32 %v57, %v63
    %v67 = vld [vmem:[%s2] sm:$0x1]
    %v69 = vlaneseq
    %v70 = vshrl.u32 %v69, 7
    %v71 = vsub.s32 0, %v70
    %v72 = vrot.slane %v67, %v71
    %v74 = vadd.f32 %v65, %v72
    %v75 = vadd.f32 %v66, %v72
    %v76 = vsel %vm31, %v74, 0.0
    %77 = vadd.xlane.f32.xlu0 %v76
    %v78 = vpop.xlane.xlu0 %77
    %v79 = vsel %vm31, %v75, 0.0
    %80 = vadd.xlane.f32.xlu0 %v79
    %v81 = vpop.xlane.xlu0 %80
    %v82 = vmul.f32 %v78, 0.03125
    %v83 = vmul.f32 %v81, 0.03125
    %v84 = vsub.f32 %v74, %v82
    %v85 = vsub.f32 %v75, %v83
    %86 = vst.msk [vmem:[#allocation5] sm:$0xff] %vm31, %v84
    %87 = vst.msk [vmem:[#allocation5 + $0x8] sm:$0xff] %vm31, %v85
    // Predicated region
    $region18: #{tpu_custom_call.1} parent=1 // pred_check
      _
    $region19: #{tpu_custom_call.1} parent=1 // pred_check_branch
      %89 = sbr.rel (0) target = $region21
    $region20: #{tpu_custom_call.1} parent=1 // pred_region
      %s91 = ssub.s32 256, 256
      %92 = vsyncadd [#allocation4], %s91
      %s93 = sshll.u32 [#allocation5], 4
      %s94 = int_to_ptr.vmem [resolvable:$true] %s93
      %99 = dma.vmem_to_hbm [thread:$0]  %s94, 256, %s3, [#allocation4], 128, 128, 8
    $region21: #{tpu_custom_call.1} parent=1 // pred_fallthru
      _
    // Predicated region
    $region22: #{tpu_custom_call.1} parent=1 // pred_check
      _
    $region23: #{tpu_custom_call.1} parent=1 // pred_check_branch
      %101 = sbr.rel (0) target = $region25
    $region24: #{tpu_custom_call.1} parent=1 // pred_region
      %102 = dma.done [#allocation4], 256
    $region25: #{tpu_custom_call.1} parent=1 // pred_fallthru
      _
    %103 = vsyncpa [#allocation3], 1
    %104 = vsyncpa [#allocation4], 1

</llo_original>
